<compile_context>
chip_gen: v6e
topology: v6e:2x2x1
jax: 0.10.0
libtpu: 0.0.40
codegen_flags: <defaults>
</compile_context>

<pallas_src>
import functools

import jax
import jax.numpy as jnp
from jax import lax
from jax.experimental import pallas as pl
from jax.experimental.pallas import tpu as pltpu

VOCAB_SIZE = 48
MAX_LEN = 32
N_SEGMENTS = 2
D_MODEL = 128
LN_EPS = 1e-5                      # torch.nn.LayerNorm default eps

TABLE_ROWS = 128                   # fused table padded to a full 128-lane / MXU-K tile
SEG_OFFSET = VOCAB_SIZE            # 48
POS_OFFSET = VOCAB_SIZE + N_SEGMENTS  # 50
assert POS_OFFSET + MAX_LEN <= TABLE_ROWS


def _embedding_kernel(ids_ref, tbl_ref, gb_ref, o_ref, *, seq_len):
    # ids_ref : (rows, 2) int32   -- column 0 = token id, column 1 = segment id (rows = B*S)
    # tbl_ref : (TABLE_ROWS, D) f32 fused table (token | segment | position | zero-pad)
    # gb_ref  : (2, D) f32        -- row 0 = gamma, row 1 = beta
    # o_ref   : (rows, D) f32
    rows = ids_ref.shape[0]
    k = tbl_ref.shape[0]
    d = tbl_ref.shape[1]

    tok_ids = ids_ref[:, 0:1]                                         # (rows, 1)
    seg_ids = ids_ref[:, 1:2]                                         # (rows, 1)
    # Position id derived in-kernel: rows are batch-major, so pos = row % seq_len.
    row_idx = lax.broadcasted_iota(jnp.int32, (rows, 1), 0)           # (rows, 1)
    pos_ids = lax.rem(row_idx, jnp.int32(seq_len))                    # (rows, 1)

    # Fused multi-hot operand (lane-dense, unmasked full 128-lane tile); the three id ranges
    # are disjoint inside the fused table, so the sum is an exact 3-hot selector.
    lane = lax.broadcasted_iota(jnp.int32, (rows, k), 1)              # (rows, 128)
    multihot = ((tok_ids == lane).astype(jnp.float32)
                + ((seg_ids + SEG_OFFSET) == lane).astype(jnp.float32)
                + ((pos_ids + POS_OFFSET) == lane).astype(jnp.float32))

    # Single MXU matmul: tok_emb + seg_emb + pos_emb in one shot.
    emb = jnp.dot(multihot, tbl_ref[...],
                  preferred_element_type=jnp.float32)                 # (rows, D)

    # LayerNorm over features: two back-to-back lane reductions, var = E[x^2] - mean^2.
    s1 = jnp.sum(emb, axis=-1, keepdims=True)
    s2 = jnp.sum(emb * emb, axis=-1, keepdims=True)
    mean = s1 * (1.0 / d)
    var = s2 * (1.0 / d) - mean * mean
    inv = lax.rsqrt(var + LN_EPS)
    gamma = gb_ref[0:1, :]
    beta = gb_ref[1:2, :]
    o_ref[...] = ((emb - mean) * inv * gamma + beta).astype(o_ref.dtype)


def make_embedding_params(tok_tbl, pos_tbl, seg_tbl, gamma, beta):
    """Hoisted one-time parameter packing (do NOT rebuild per forward)."""
    V, D = tok_tbl.shape
    fused = jnp.zeros((TABLE_ROWS, D), jnp.float32)
    fused = fused.at[:V, :].set(tok_tbl)
    fused = fused.at[SEG_OFFSET:SEG_OFFSET + N_SEGMENTS, :].set(seg_tbl)
    fused = fused.at[POS_OFFSET:POS_OFFSET + MAX_LEN, :].set(pos_tbl)
    gamma_beta = jnp.concatenate([gamma.reshape(1, D), beta.reshape(1, D)], axis=0)
    return fused, gamma_beta


def bert_embedding(x, seg, fused_tbl, gamma_beta):
    B, S = x.shape
    D = fused_tbl.shape[1]
    rows = B * S

    # Wrapper-side layout plumbing (cheap): pack both id streams into one (rows, 2) column pair.
    ids = jnp.stack([x.reshape(rows), seg.reshape(rows)], axis=-1).astype(jnp.int32)

    vmem_spec = pl.BlockSpec(memory_space=pltpu.MemorySpace.VMEM)
    out = pl.pallas_call(
        functools.partial(_embedding_kernel, seq_len=S),
        out_shape=jax.ShapeDtypeStruct((rows, D), jnp.float32),
        in_specs=[vmem_spec] * 3,
        out_specs=vmem_spec,
    )(ids, fused_tbl, gamma_beta)

    return out.reshape(B, S, D)


def _reference(x, seg, tok_tbl, pos_tbl, seg_tbl, gamma, beta):
    S = x.shape[1]
    emb = tok_tbl[x] + pos_tbl[jnp.arange(S)][None, :, :] + seg_tbl[seg]
    mean = jnp.mean(emb, axis=-1, keepdims=True)
    var = jnp.mean((emb - mean) ** 2, axis=-1, keepdims=True)
    return (emb - mean) / jnp.sqrt(var + LN_EPS) * gamma[0] + beta[0]


if __name__ == "__main__":
    B, S = 2, 16
    key = jax.random.PRNGKey(0)
    k_tok, k_pos, k_seg, k_x, k_s = jax.random.split(key, 5)

    # Deterministic synthetic parameters (nn.Embedding ~ N(0,1); scaled for stability).
    tok_tbl = (0.02 * jax.random.normal(k_tok, (VOCAB_SIZE, D_MODEL))).astype(jnp.float32)
    pos_tbl = (0.02 * jax.random.normal(k_pos, (MAX_LEN, D_MODEL))).astype(jnp.float32)
    seg_tbl = (0.02 * jax.random.normal(k_seg, (N_SEGMENTS, D_MODEL))).astype(jnp.float32)
    gamma = jnp.ones((1, D_MODEL), jnp.float32)   # LayerNorm weight
    beta = jnp.zeros((1, D_MODEL), jnp.float32)   # LayerNorm bias

    # One-time parameter packing (equivalent of module __init__).
    fused_tbl, gamma_beta = make_embedding_params(tok_tbl, pos_tbl, seg_tbl, gamma, beta)
    fused_tbl = jax.block_until_ready(fused_tbl)

    x = jax.random.randint(k_x, (B, S), 0, VOCAB_SIZE, dtype=jnp.int32)
    seg = jax.random.randint(k_s, (B, S), 0, N_SEGMENTS, dtype=jnp.int32)

    out = bert_embedding(x, seg, fused_tbl, gamma_beta)
    out = jax.block_until_ready(out)

    ref = _reference(x, seg, tok_tbl, pos_tbl, seg_tbl, gamma, beta)
    assert out.shape == (B, S, D_MODEL)
    assert jnp.allclose(out, ref, atol=1e-4, rtol=1e-4), "mismatch vs reference"

    print("KERNEL_OK")
</pallas_src>

<mosaic_0001>
module attributes {stable_mosaic.version = 11 : i64} {
  func.func @_embedding_kernel(%arg0: memref<32x2xi32, #tpu.memory_space<vmem>>, %arg1: memref<128x128xf32, #tpu.memory_space<vmem>>, %arg2: memref<2x128xf32, #tpu.memory_space<vmem>>, %arg3: memref<32x128xf32, #tpu.memory_space<vmem>>) attributes {dimension_semantics = [], scalar_prefetch = 0 : i64, scratch_operands = 0 : i64, tpu.core_type = #tpu.core_type<tc>} {
    %c0 = arith.constant 0 : index
    %c0_0 = arith.constant 0 : index
    %0 = vector.load %arg0[%c0, %c0_0] : memref<32x2xi32, #tpu.memory_space<vmem>>, vector<32x1xi32>
    %c0_1 = arith.constant 0 : index
    %c1 = arith.constant 1 : index
    %1 = vector.load %arg0[%c0_1, %c1] : memref<32x2xi32, #tpu.memory_space<vmem>>, vector<32x1xi32>
    %2 = tpu.iota {dimensions = array<i32: 0>} : vector<32x1xi32>
    %c16_i32 = arith.constant 16 : i32
    %3 = vector.broadcast %c16_i32 : i32 to vector<32x1xi32>
    %4 = arith.remsi %2, %3 : vector<32x1xi32>
    %5 = tpu.iota {dimensions = array<i32: 1>} : vector<32x128xi32>
    %6 = vector.broadcast %0 : vector<32x1xi32> to vector<32x128xi32>
    %7 = arith.cmpi eq, %6, %5 : vector<32x128xi32>
    %8 = arith.extui %7 : vector<32x128xi1> to vector<32x128xi32>
    %9 = arith.sitofp %8 : vector<32x128xi32> to vector<32x128xf32>
    %c48_i32 = arith.constant 48 : i32
    %10 = vector.broadcast %c48_i32 : i32 to vector<32x1xi32>
    %11 = arith.addi %1, %10 : vector<32x1xi32>
    %12 = vector.broadcast %11 : vector<32x1xi32> to vector<32x128xi32>
    %13 = arith.cmpi eq, %12, %5 : vector<32x128xi32>
    %14 = arith.extui %13 : vector<32x128xi1> to vector<32x128xi32>
    %15 = arith.sitofp %14 : vector<32x128xi32> to vector<32x128xf32>
    %16 = arith.addf %9, %15 : vector<32x128xf32>
    %c50_i32 = arith.constant 50 : i32
    %17 = vector.broadcast %c50_i32 : i32 to vector<32x1xi32>
    %18 = arith.addi %4, %17 : vector<32x1xi32>
    %19 = vector.broadcast %18 : vector<32x1xi32> to vector<32x128xi32>
    %20 = arith.cmpi eq, %19, %5 : vector<32x128xi32>
    %21 = arith.extui %20 : vector<32x128xi1> to vector<32x128xi32>
    %22 = arith.sitofp %21 : vector<32x128xi32> to vector<32x128xf32>
    %23 = arith.addf %16, %22 : vector<32x128xf32>
    %c0_2 = arith.constant 0 : index
    %c0_3 = arith.constant 0 : index
    %24 = vector.load %arg1[%c0_2, %c0_3] : memref<128x128xf32, #tpu.memory_space<vmem>>, vector<128x128xf32>
    %cst = arith.constant dense<0.000000e+00> : vector<32x128xf32>
    %25 = tpu.matmul %23, %24, %cst {dimension_numbers = #tpu.dot_dimension_numbers<[1], [0], [0], [1], [0, 0, 1, 1], [], []>} : vector<32x128xf32>, vector<128x128xf32>, vector<32x128xf32> -> vector<32x128xf32>
    %cst_4 = arith.constant dense<0.000000e+00> : vector<32xf32>
    %26 = vector.multi_reduction <add>, %25, %cst_4 [1] : vector<32x128xf32> to vector<32xf32>
    %27 = vector.shape_cast %26 : vector<32xf32> to vector<32x1xf32>
    %28 = arith.mulf %25, %25 : vector<32x128xf32>
    %cst_5 = arith.constant dense<0.000000e+00> : vector<32xf32>
    %29 = vector.multi_reduction <add>, %28, %cst_5 [1] : vector<32x128xf32> to vector<32xf32>
    %30 = vector.shape_cast %29 : vector<32xf32> to vector<32x1xf32>
    %cst_6 = arith.constant 7.812500e-03 : f32
    %31 = vector.broadcast %cst_6 : f32 to vector<32x1xf32>
    %32 = arith.mulf %27, %31 : vector<32x1xf32>
    %cst_7 = arith.constant 7.812500e-03 : f32
    %33 = vector.broadcast %cst_7 : f32 to vector<32x1xf32>
    %34 = arith.mulf %30, %33 : vector<32x1xf32>
    %35 = arith.mulf %32, %32 : vector<32x1xf32>
    %36 = arith.subf %34, %35 : vector<32x1xf32>
    %cst_8 = arith.constant 9.99999974E-6 : f32
    %37 = vector.broadcast %cst_8 : f32 to vector<32x1xf32>
    %38 = arith.addf %36, %37 : vector<32x1xf32>
    %39 = math.rsqrt %38 : vector<32x1xf32>
    %c0_9 = arith.constant 0 : index
    %c0_10 = arith.constant 0 : index
    %40 = vector.load %arg2[%c0_9, %c0_10] : memref<2x128xf32, #tpu.memory_space<vmem>>, vector<1x128xf32>
    %c1_11 = arith.constant 1 : index
    %c0_12 = arith.constant 0 : index
    %41 = vector.load %arg2[%c1_11, %c0_12] : memref<2x128xf32, #tpu.memory_space<vmem>>, vector<1x128xf32>
    %42 = vector.broadcast %32 : vector<32x1xf32> to vector<32x128xf32>
    %43 = arith.subf %25, %42 : vector<32x128xf32>
    %44 = vector.broadcast %39 : vector<32x1xf32> to vector<32x128xf32>
    %45 = arith.mulf %43, %44 : vector<32x128xf32>
    %46 = vector.broadcast %40 : vector<1x128xf32> to vector<32x128xf32>
    %47 = arith.mulf %45, %46 : vector<32x128xf32>
    %48 = vector.broadcast %41 : vector<1x128xf32> to vector<32x128xf32>
    %49 = arith.addf %47, %48 : vector<32x128xf32>
    %c0_13 = arith.constant 0 : index
    %c0_14 = arith.constant 0 : index
    %50 = vector.load %arg3[%c0_13, %c0_14] : memref<32x128xf32, #tpu.memory_space<vmem>>, vector<32x128xf32>
    tpu.vector_store %arg3[%c0_13, %c0_14], %49 {strides = array<i32>} : memref<32x128xf32, #tpu.memory_space<vmem>>, vector<32x128xf32>,
    return
  }
}

</mosaic_0001>

<llo_original>
// kernel: tpu_custom_call.1
$region0: #{tpu_custom_call.1}
  #allocation0 [shape = 'u32[]', space=smem, size = 0x4, offset = 0x4, fixed_abs, tag = 'smem constant byte address 0x4 - core index']
  #allocation1 [shape = 'u32[144,128]{1,0:T(1,128)}', space=vmem, size = 0x12000, scoped, tag = 'internal scratch']
  %s0 = inlined_call_operand.vmem [shape: s32[32,2], index: 0, kind: input, shape index: {}]
  %s1 = inlined_call_operand.hbm [shape: f32[128,128], index: 1, kind: input, shape index: {}]
  %s2 = inlined_call_operand.vmem [shape: f32[2,128], index: 2, kind: input, shape index: {}]
  %s3 = inlined_call_operand.hbm [shape: f32[32,128], index: 3, kind: output, shape index: {}]
  %s4 = sld [smem:[#allocation0]]
  $region26: #{tpu_custom_call.1} parent=0
    _
  %s6 = ssub.s32 1, %s4
  %s7 = scalar_select 0, %s6, %s4
  $region1: #{tpu_custom_call.1} parent=0
    #allocation2 [shape = 'u8[65536]{0}', space=vmem, size = 0x10000, scoped, tag = 'input window, operand 1, single buffered']
    #allocation3 [shape = 's32[1]{0}', space=sflag, size = 0x4, scoped, tag = 'scoped memory for tpu_custom_call.1']
    #allocation4 [shape = 's32[1]{0}', space=sflag, size = 0x4, scoped, tag = 'scoped memory for tpu_custom_call.1']
    #allocation5 [shape = 'u8[16384]{0}', space=vmem, size = 0x4000, scoped, tag = 'output window, operand 0, single buffered']
    %8 = vsyncpa [#allocation3], 0
    %9 = vsyncpa [#allocation4], 0
    // Predicated region
    $region2: #{tpu_custom_call.1} parent=1 // pred_check
      _
    $region3: #{tpu_custom_call.1} parent=1 // pred_check_branch
      %11 = sbr.rel (0) target = $region5
    $region4: #{tpu_custom_call.1} parent=1 // pred_region
      _
    $region5: #{tpu_custom_call.1} parent=1 // pred_fallthru
      _
    // Predicated region
    $region6: #{tpu_custom_call.1} parent=1 // pred_check
      _
    $region7: #{tpu_custom_call.1} parent=1 // pred_check_branch
      %13 = sbr.rel (0) target = $region9
    $region8: #{tpu_custom_call.1} parent=1 // pred_region
      %s15 = ssub.s32 2048, 2048
      %16 = vsyncadd [#allocation3], %s15
      %s17 = sshll.u32 [#allocation2], 4
      %s18 = int_to_ptr.vmem [resolvable:$true] %s17
      %23 = dma.hbm_to_vmem [thread:$0]  %s1, 2048, %s18, [#allocation3], 128, 128, 8
    $region9: #{tpu_custom_call.1} parent=1 // pred_fallthru
      _
    // Predicated region
    $region10: #{tpu_custom_call.1} parent=1 // pred_check
      _
    $region11: #{tpu_custom_call.1} parent=1 // pred_check_branch
      %25 = sbr.rel (0) target = $region13
    $region12: #{tpu_custom_call.1} parent=1 // pred_region
      _
    $region13: #{tpu_custom_call.1} parent=1 // pred_fallthru
      _
    // Predicated region
    $region14: #{tpu_custom_call.1} parent=1 // pred_check
      _
    $region15: #{tpu_custom_call.1} parent=1 // pred_check_branch
      %27 = sbr.rel (0) target = $region17
    $region16: #{tpu_custom_call.1} parent=1 // pred_region
      %28 = dma.done [#allocation3], 2048
    $region17: #{tpu_custom_call.1} parent=1 // pred_fallthru
      _
    %v29 = vld [vmem:[%s0] sm:$0xff]
    %v30 = vld [vmem:[%s0 + $0x8] sm:$0xff]
    %v31 = vld [vmem:[%s0 + $0x10] sm:$0xff]
    %v32 = vld [vmem:[%s0 + $0x18] sm:$0xff]
    %v33 = vlaneseq
    %v34 = vshrl.u32 %v33, 7
    %v35 = vadd.s32 %v34, 8
    %v36 = vadd.s32 %v34, 16
    %v37 = vadd.s32 %v34, 24
    %vm38 = vcmp.lt.s32.totalorder %v34, 0
    %v39 = vsub.s32 0, %v34
    %v40 = vsel %vm38, %v39, %v34
    %v41 = vshrl.u32 %v40, 4
    %v42 = vand.u32 %v40, 15
    %v43 = vsub.s32 0, %v42
    %v44 = vsel %vm38, %v43, %v42
    %vm45 = vcmp.lt.s32.totalorder %v35, 0
    %v46 = vsub.s32 0, %v35
    %v47 = vsel %vm45, %v46, %v35
    %v48 = vshrl.u32 %v47, 4
    %v49 = vand.u32 %v47, 15
    %v50 = vsub.s32 0, %v49
    %v51 = vsel %vm45, %v50, %v49
    %vm52 = vcmp.lt.s32.totalorder %v36, 0
    %v53 = vsub.s32 0, %v36
    %v54 = vsel %vm52, %v53, %v36
    %v55 = vshrl.u32 %v54, 4
    %v56 = vand.u32 %v54, 15
    %v57 = vsub.s32 0, %v56
    %v58 = vsel %vm52, %v57, %v56
    %vm59 = vcmp.lt.s32.totalorder %v37, 0
    %v60 = vsub.s32 0, %v37
    %v61 = vsel %vm59, %v60, %v37
    %v62 = vshrl.u32 %v61, 4
    %v63 = vand.u32 %v61, 15
    %v64 = vsub.s32 0, %v63
    %v65 = vsel %vm59, %v64, %v63
    %v66 = vlaneseq
    %v67 = vand.u32 %v66, 127
    %68 = vset.pattern.permute.xlu0 0
    %69 = vperm.xlu0 %68, %v29
    %v70 = vpop.permute.xlu0 %69
    %71 = vset.pattern.permute.xlu0 0
    %72 = vperm.xlu0 %71, %v30
    %v73 = vpop.permute.xlu0 %72
    %74 = vset.pattern.permute.xlu0 0
    %75 = vperm.xlu0 %74, %v31
    %v76 = vpop.permute.xlu0 %75
    %77 = vset.pattern.permute.xlu0 0
    %78 = vperm.xlu0 %77, %v32
    %v79 = vpop.permute.xlu0 %78
    %vm80 = vcmp.eq.s32.totalorder %v70, %v67
    %vm81 = vcmp.eq.s32.totalorder %v73, %v67
    %vm82 = vcmp.eq.s32.totalorder %v76, %v67
    %vm83 = vcmp.eq.s32.totalorder %v79, %v67
    %v84 = vsel %vm80, 1, 0
    %v85 = vsel %vm81, 1, 0
    %v86 = vsel %vm82, 1, 0
    %v87 = vsel %vm83, 1, 0
    %v88 = vcvt.s32.f32 %v84
    %v89 = vcvt.s32.f32 %v85
    %v90 = vcvt.s32.f32 %v86
    %v91 = vcvt.s32.f32 %v87
    %v92 = vadd.s32 %v29, 48
    %v93 = vadd.s32 %v30, 48
    %v94 = vadd.s32 %v31, 48
    %v95 = vadd.s32 %v32, 48
    %96 = vset.pattern.permute.xlu0 1
    %97 = vperm.xlu0 %96, %v92
    %v98 = vpop.permute.xlu0 %97
    %99 = vset.pattern.permute.xlu0 1
    %100 = vperm.xlu0 %99, %v93
    %v101 = vpop.permute.xlu0 %100
    %102 = vset.pattern.permute.xlu0 1
    %103 = vperm.xlu0 %102, %v94
    %v104 = vpop.permute.xlu0 %103
    %105 = vset.pattern.permute.xlu0 1
    %106 = vperm.xlu0 %105, %v95
    %v107 = vpop.permute.xlu0 %106
    %vm108 = vcmp.eq.s32.totalorder %v98, %v67
    %vm109 = vcmp.eq.s32.totalorder %v101, %v67
    %vm110 = vcmp.eq.s32.totalorder %v104, %v67
    %vm111 = vcmp.eq.s32.totalorder %v107, %v67
    %v112 = vsel %vm108, 1, 0
    %v113 = vsel %vm109, 1, 0
    %v114 = vsel %vm110, 1, 0
    %v115 = vsel %vm111, 1, 0
    %v116 = vcvt.s32.f32 %v112
    %v117 = vcvt.s32.f32 %v113
    %v118 = vcvt.s32.f32 %v114
    %v119 = vcvt.s32.f32 %v115
    %v120 = vadd.f32 %v88, %v116
    %v121 = vadd.f32 %v89, %v117
    %v122 = vadd.f32 %v90, %v118
    %v123 = vadd.f32 %v91, %v119
    %v124 = vadd.s32 %v44, 50
    %v125 = vadd.s32 %v51, 50
    %v126 = vadd.s32 %v58, 50
    %v127 = vadd.s32 %v65, 50
    %vm128 = vcmp.eq.s32.totalorder %v124, %v67
    %vm129 = vcmp.eq.s32.totalorder %v125, %v67
    %vm130 = vcmp.eq.s32.totalorder %v126, %v67
    %vm131 = vcmp.eq.s32.totalorder %v127, %v67
    %v132 = vsel %vm128, 1, 0
    %v133 = vsel %vm129, 1, 0
    %v134 = vsel %vm130, 1, 0
    %v135 = vsel %vm131, 1, 0
    %v136 = vcvt.s32.f32 %v132
    %v137 = vcvt.s32.f32 %v133
    %v138 = vcvt.s32.f32 %v134
    %v139 = vcvt.s32.f32 %v135
    %v140 = vadd.f32 %v120, %v136
    %v141 = vadd.f32 %v121, %v137
    %v142 = vadd.f32 %v122, %v138
    %v143 = vadd.f32 %v123, %v139
    %v144 = vld [vmem:[#allocation2] sm:$0xff]
    %v145 = vld [vmem:[#allocation2 + $0x8] sm:$0xff]
    %v146 = vld [vmem:[#allocation2 + $0x10] sm:$0xff]
    %v147 = vld [vmem:[#allocation2 + $0x18] sm:$0xff]
    %v148 = vld [vmem:[#allocation2 + $0x20] sm:$0xff]
    %v149 = vld [vmem:[#allocation2 + $0x28] sm:$0xff]
    %v150 = vld [vmem:[#allocation2 + $0x30] sm:$0xff]
    %v151 = vld [vmem:[#allocation2 + $0x38] sm:$0xff]
    %v152 = vld [vmem:[#allocation2 + $0x40] sm:$0xff]
    %v153 = vld [vmem:[#allocation2 + $0x48] sm:$0xff]
    %v154 = vld [vmem:[#allocation2 + $0x50] sm:$0xff]
    %v155 = vld [vmem:[#allocation2 + $0x58] sm:$0xff]
    %v156 = vld [vmem:[#allocation2 + $0x60] sm:$0xff]
    %v157 = vld [vmem:[#allocation2 + $0x68] sm:$0xff]
    %v158 = vld [vmem:[#allocation2 + $0x70] sm:$0xff]
    %v159 = vld [vmem:[#allocation2 + $0x78] sm:$0xff]
    %160 = vmatprep.subr.mxu0 0.0
    %161 = vmatpush1.msra.mxu0 %v159
    %162 = vmatprep.subr.mxu0 0.0
    %163 = vmatpush1.msra.mxu0 %v158
    %164 = vmatprep.subr.mxu0 0.0
    %165 = vmatpush1.msra.mxu0 %v157
    %166 = vmatprep.subr.mxu0 0.0
    %167 = vmatpush1.msra.mxu0 %v156
    %168 = vmatprep.subr.mxu0 0.0
    %169 = vmatpush1.msra.mxu0 %v155
    %170 = vmatprep.subr.mxu0 0.0
    %171 = vmatpush1.msra.mxu0 %v154
    %172 = vmatprep.subr.mxu0 0.0
    %173 = vmatpush1.msra.mxu0 %v153
    %174 = vmatprep.subr.mxu0 0.0
    %175 = vmatpush1.msra.mxu0 %v152
    %176 = vmatprep.subr.mxu0 0.0
    %177 = vmatpush1.msra.mxu0 %v151
    %178 = vmatprep.subr.mxu0 0.0
    %179 = vmatpush1.msra.mxu0 %v150
    %180 = vmatprep.subr.mxu0 0.0
    %181 = vmatpush1.msra.mxu0 %v149
    %182 = vmatprep.subr.mxu0 0.0
    %183 = vmatpush1.msra.mxu0 %v148
    %184 = vmatprep.subr.mxu0 0.0
    %185 = vmatpush1.msra.mxu0 %v147
    %186 = vmatprep.subr.mxu0 0.0
    %187 = vmatpush1.msra.mxu0 %v146
    %188 = vmatprep.subr.mxu0 0.0
    %189 = vmatpush1.msra.mxu0 %v145
    %190 = vmatprep.subr.mxu0 0.0
    %191 = vmatpush1.msra.mxu0 %v144
    %192 = vmatprep.subr.mxu0 0.0
    %193 = vmatpush2.msra.mxu0 0.0
    %194 = vmatprep.subr.mxu0 0.0
    %195 = vmatpush2.msra.mxu0 0.0
    %196 = vmatprep.subr.mxu0 0.0
    %197 = vmatpush2.msra.mxu0 0.0
    %198 = vmatprep.subr.mxu0 0.0
    %199 = vmatpush2.msra.mxu0 0.0
    %200 = vmatprep.subr.mxu0 0.0
    %201 = vmatpush2.msra.mxu0 0.0
    %202 = vmatprep.subr.mxu0 0.0
    %203 = vmatpush2.msra.mxu0 0.0
    %204 = vmatprep.subr.mxu0 0.0
    %205 = vmatpush2.msra.mxu0 0.0
    %206 = vmatprep.subr.mxu0 0.0
    %207 = vmatpush2.msra.mxu0 0.0
    %208 = vmatprep.subr.mxu0 0.0
    %209 = vmatpush2.msra.mxu0 0.0
    %210 = vmatprep.subr.mxu0 0.0
    %211 = vmatpush2.msra.mxu0 0.0
    %212 = vmatprep.subr.mxu0 0.0
    %213 = vmatpush2.msra.mxu0 0.0
    %214 = vmatprep.subr.mxu0 0.0
    %215 = vmatpush2.msra.mxu0 0.0
    %216 = vmatprep.subr.mxu0 0.0
    %217 = vmatpush2.msra.mxu0 0.0
    %218 = vmatprep.subr.mxu0 0.0
    %219 = vmatpush2.msra.mxu0 0.0
    %220 = vmatprep.subr.mxu0 0.0
    %221 = vmatpush2.msra.mxu0 0.0
    %222 = vmatprep.subr.mxu0 0.0
    %223 = vmatpush2.msra.mxu0 0.0
    %224 = vmatprep.mubr.f32.mxu0 0.0
    %225 = vmatmul.mubr.f32.gmra.mxu0 %v140
    %v226 = vpop.f32.mrf.mxu0
    %v227 = vadd.f32 0.0, %v226
    %v228 = vpop.f32.mrf.mxu0
    %229 = vmatprep.mubr.f32.mxu0 0.0
    %230 = vmatmul.mubr.f32.gmra.mxu0 %v141
    %v231 = vpop.f32.mrf.mxu0
    %v232 = vadd.f32 0.0, %v231
    %v233 = vpop.f32.mrf.mxu0
    %234 = vmatprep.mubr.f32.mxu0 0.0
    %235 = vmatmul.mubr.f32.gmra.mxu0 %v142
    %v236 = vpop.f32.mrf.mxu0
    %v237 = vadd.f32 0.0, %v236
    %v238 = vpop.f32.mrf.mxu0
    %239 = vmatprep.mubr.f32.mxu0 0.0
    %240 = vmatmul.mubr.f32.gmra.mxu0 %v143
    %v241 = vpop.f32.mrf.mxu0
    %v242 = vadd.f32 0.0, %v241
    %v243 = vpop.f32.mrf.mxu0
    %244 = vdwg.mxu0
    %245 = vadd.xlane.f32.xlu0 %v227
    %v246 = vpop.xlane.xlu0 %245
    %247 = vadd.xlane.f32.xlu0 %v232
    %v248 = vpop.xlane.xlu0 %247
    %249 = vadd.xlane.f32.xlu0 %v237
    %v250 = vpop.xlane.xlu0 %249
    %251 = vadd.xlane.f32.xlu0 %v242
    %v252 = vpop.xlane.xlu0 %251
    %v253 = vmul.f32 %v227, %v227
    %v254 = vmul.f32 %v232, %v232
    %v255 = vmul.f32 %v237, %v237
    %v256 = vmul.f32 %v242, %v242
    %257 = vadd.xlane.f32.xlu0 %v253
    %v258 = vpop.xlane.xlu0 %257
    %259 = vadd.xlane.f32.xlu0 %v254
    %v260 = vpop.xlane.xlu0 %259
    %261 = vadd.xlane.f32.xlu0 %v255
    %v262 = vpop.xlane.xlu0 %261
    %263 = vadd.xlane.f32.xlu0 %v256
    %v264 = vpop.xlane.xlu0 %263
    %v265 = vmul.f32 %v246, 0.0078125
    %v266 = vmul.f32 %v248, 0.0078125
    %v267 = vmul.f32 %v250, 0.0078125
    %v268 = vmul.f32 %v252, 0.0078125
    %v269 = vmul.f32 %v258, 0.0078125
    %v270 = vmul.f32 %v260, 0.0078125
    %v271 = vmul.f32 %v262, 0.0078125
    %v272 = vmul.f32 %v264, 0.0078125
    %v273 = vmul.f32 %v265, %v265
    %v274 = vmul.f32 %v266, %v266
    %v275 = vmul.f32 %v267, %v267
    %v276 = vmul.f32 %v268, %v268
    %v277 = vsub.f32 %v269, %v273
    %v278 = vsub.f32 %v270, %v274
    %v279 = vsub.f32 %v271, %v275
    %v280 = vsub.f32 %v272, %v276
    %v281 = vadd.f32 %v277, 1e-05
    %v282 = vadd.f32 %v278, 1e-05
    %v283 = vadd.f32 %v279, 1e-05
    %v284 = vadd.f32 %v280, 1e-05
    %v285 = vrsqrt.pop %v281
    %v286 = vrsqrt.pop %v282
    %v287 = vrsqrt.pop %v283
    %v288 = vrsqrt.pop %v284
    %v289 = vld [vmem:[%s2] sm:$0x1]
    %v290 = vld [vmem:[%s2 + $0x1] sm:$0x1]
    %v291 = vsub.f32 %v227, %v265
    %v292 = vsub.f32 %v232, %v266
    %v293 = vsub.f32 %v237, %v267
    %v294 = vsub.f32 %v242, %v268
    %v295 = vmul.f32 %v291, %v285
    %v296 = vmul.f32 %v292, %v286
    %v297 = vmul.f32 %v293, %v287
    %v298 = vmul.f32 %v294, %v288
    %v299 = vlaneseq
    %v300 = vshrl.u32 %v299, 7
    %v301 = vsub.s32 0, %v300
    %v302 = vrot.slane %v289, %v301
    %v303 = vmul.f32 %v295, %v302
    %v304 = vmul.f32 %v296, %v302
    %v305 = vmul.f32 %v297, %v302
    %v306 = vmul.f32 %v298, %v302
    %v307 = vlaneseq
    %v308 = vshrl.u32 %v307, 7
    %v309 = vsub.s32 0, %v308
    %v310 = vrot.slane %v290, %v309
    %v311 = vadd.f32 %v303, %v310
    %v312 = vadd.f32 %v304, %v310
    %v313 = vadd.f32 %v305, %v310
    %v314 = vadd.f32 %v306, %v310
    %315 = vst [vmem:[#allocation5] sm:$0xff] %v311
    %316 = vst [vmem:[#allocation5 + $0x8] sm:$0xff] %v312
    %317 = vst [vmem:[#allocation5 + $0x10] sm:$0xff] %v313
    %318 = vst [vmem:[#allocation5 + $0x18] sm:$0xff] %v314
    // Predicated region
    $region18: #{tpu_custom_call.1} parent=1 // pred_check
      _
    $region19: #{tpu_custom_call.1} parent=1 // pred_check_branch
      %320 = sbr.rel (0) target = $region21
    $region20: #{tpu_custom_call.1} parent=1 // pred_region
      %s322 = ssub.s32 512, 512
      %323 = vsyncadd [#allocation4], %s322
      %s324 = sshll.u32 [#allocation5], 4
      %s325 = int_to_ptr.vmem [resolvable:$true] %s324
      %330 = dma.vmem_to_hbm [thread:$0]  %s325, 512, %s3, [#allocation4], 128, 128, 8
    $region21: #{tpu_custom_call.1} parent=1 // pred_fallthru
      _
    // Predicated region
    $region22: #{tpu_custom_call.1} parent=1 // pred_check
      _
    $region23: #{tpu_custom_call.1} parent=1 // pred_check_branch
      %332 = sbr.rel (0) target = $region25
    $region24: #{tpu_custom_call.1} parent=1 // pred_region
      %333 = dma.done [#allocation4], 512
    $region25: #{tpu_custom_call.1} parent=1 // pred_fallthru
      _
    %334 = vsyncpa [#allocation3], 1
    %335 = vsyncpa [#allocation4], 1

</llo_original>
